<compile_context>
chip_gen: v6e
topology: v6e:2x2x1
jax: 0.10.0
libtpu: 0.0.40
codegen_flags: <defaults>
</compile_context>

<pallas_src>
import jax
import jax.numpy as jnp
from jax import lax
from jax.experimental import pallas as pl
from jax.experimental.pallas import tpu as pltpu

PACK = 8        # samples packed per 128-lane row (8 * 16 features = 128)
CHUNK = 256     # rows per in-kernel strip (256 x 128 f32 = 32 vregs of input)
TBR_CAP = 4096  # max rows per grid block (= 32768 samples, ~2.5 MiB/step)


def _round_up(x, m):
    return ((x + m - 1) // m) * m


def _make_kernel(tbr, chunk):
    """Kernel for one (tbr, 128) activation block, strip-mined in `chunk` rows."""
    n_chunks = tbr // chunk
    assert n_chunks * chunk == tbr

    def kernel(x_ref, w1_ref, b1_ref, w2_ref, b2_ref, o_ref):
        # Weights / biases are tiny and VMEM-resident across the whole grid.
        w1b = w1_ref[...]   # (128, 64)
        b1t = b1_ref[...]   # (1, 64)
        w2b = w2_ref[...]   # (64, 32)
        b2t = b2_ref[...]   # (1, 32)

        def step(r0):
            xs = x_ref[pl.ds(r0, chunk), :]                               # (chunk, 128)
            h = jnp.dot(xs, w1b, preferred_element_type=jnp.float32) + b1t
            h = jnp.maximum(h, 0.0)                                       # (chunk, 64)
            y = jnp.dot(h, w2b, preferred_element_type=jnp.float32) + b2t
            o_ref[pl.ds(r0, chunk), :] = y.astype(o_ref.dtype)            # (chunk, 32)

        if n_chunks == 1:
            step(0)
        else:
            def body(c, carry):
                step(pl.multiple_of(c * chunk, chunk))
                return carry
            lax.fori_loop(0, n_chunks, body, 0, unroll=True)

    return kernel


def micro_model(x, w1, b1, w2, b2, *, tbr_cap=TBR_CAP, chunk=CHUNK):
    """x: (B, 16); w1: (8, 16); b1: (8,); w2: (4, 8); b2: (4,) -> (B, 4)."""
    B = x.shape[0]
    dtype = x.dtype

    # Pad batch to a multiple of PACK (and to >= 64 rows*PACK for tiny demo
    # batches so the packed array has at least 8 sublane rows).  For typical
    # B (multiple of 8, >= 64) this is a no-op -- no data copy.
    b_pad = _round_up(max(B, PACK * 8), PACK)
    xp = x if b_pad == B else jnp.pad(x, ((0, b_pad - B), (0, 0)))
    n_rows = b_pad // PACK
    x2 = xp.reshape(n_rows, PACK * 16)              # (n_rows, 128) -- free reshape

    # Block-diagonal weight packing (tiny; could be cached by the caller).
    eye = jnp.eye(PACK, dtype=w1.dtype)
    w1b = jnp.kron(eye, w1.T)                       # (128, 64)
    w2b = jnp.kron(eye, w2.T)                       # (64, 32)
    b1t = jnp.tile(b1, PACK).reshape(1, PACK * 8)   # (1, 64)
    b2t = jnp.tile(b2, PACK).reshape(1, PACK * 4)   # (1, 32)

    # Grid / tile selection.
    if n_rows <= chunk:
        tbr = n_rows          # single full-extent block; one strip in the kernel
        k_chunk = n_rows
    else:
        n_blocks = max(2, pl.cdiv(n_rows, tbr_cap))
        if n_blocks % 2:
            n_blocks += 1     # even block count: balanced across v7x's 2 TensorCores
        tbr = _round_up(pl.cdiv(n_rows, n_blocks), chunk)   # multiple of chunk (and 8)
        k_chunk = chunk
    n_blocks = pl.cdiv(n_rows, tbr)  # last block may be partial (OOB writes masked)

    cost = pl.CostEstimate(
        flops=2 * n_rows * (128 * 64 + 64 * 32),
        transcendentals=0,
        bytes_accessed=4 * (n_rows * 128 + n_rows * 32 + 128 * 64 + 64 + 64 * 32 + 32),
    )

    y2 = pl.pallas_call(
        _make_kernel(tbr, k_chunk),
        out_shape=jax.ShapeDtypeStruct((n_rows, PACK * 4), dtype),
        grid_spec=pl.GridSpec(
            grid=(n_blocks,),
            in_specs=[
                # Activation tile: lane-dense (last dim 128).
                pl.BlockSpec((tbr, 128), lambda i: (i, 0)),
                # Packed weights / biases: full-extent, VMEM-resident across steps.
                pl.BlockSpec((128, 64), lambda i: (0, 0)),
                pl.BlockSpec((1, 64), lambda i: (0, 0)),
                pl.BlockSpec((64, 32), lambda i: (0, 0)),
                pl.BlockSpec((1, 32), lambda i: (0, 0)),
            ],
            out_specs=pl.BlockSpec((tbr, PACK * 4), lambda i: (i, 0)),
        ),
        compiler_params=pltpu.CompilerParams(
            dimension_semantics=("parallel",),   # megacore-shardable batch axis
        ),
        cost_estimate=cost,
    )(x2, w1b, b1t, w2b, b2t)

    # Free reshape back to (b_pad, 4); drop padded rows (no-op when b_pad == B).
    y = y2.reshape(b_pad, 4)
    return y[:B] if b_pad != B else y


def init_params(key):
    """Deterministic init mimicking PyTorch Linear default (uniform +/- 1/sqrt(fan_in)).

    Weights are stored in PyTorch's [out_features, in_features] layout.
    """
    k1, k2, k3, k4 = jax.random.split(key, 4)
    bound1 = 1.0 / jnp.sqrt(16.0)
    bound2 = 1.0 / jnp.sqrt(8.0)
    w1 = jax.random.uniform(k1, (8, 16), jnp.float32, -bound1, bound1)
    b1 = jax.random.uniform(k2, (8,), jnp.float32, -bound1, bound1)
    w2 = jax.random.uniform(k3, (4, 8), jnp.float32, -bound2, bound2)
    b2 = jax.random.uniform(k4, (4,), jnp.float32, -bound2, bound2)
    return w1, b1, w2, b2


def _reference(x, w1, b1, w2, b2):
    # Same math as torch: relu(x @ W1.T + b1) @ W2.T + b2
    return jnp.maximum(x @ w1.T + b1, 0.0) @ w2.T + b2


if __name__ == "__main__":
    key = jax.random.PRNGKey(0)
    kx, kp, kx2, kx3 = jax.random.split(key, 4)

    w1, b1, w2, b2 = init_params(kp)

    # 1) Small-shape check matching the PyTorch module spec (batch=2, in=16).
    x = jax.random.normal(kx, (2, 16), jnp.float32)
    out = jax.block_until_ready(micro_model(x, w1, b1, w2, b2))
    ref = _reference(x, w1, b1, w2, b2)
    assert out.shape == (2, 4)
    assert jnp.allclose(out, ref, atol=1e-5, rtol=1e-5)

    # 2) Single-block packed path (B multiple of 8, no padding copies).
    xb = jax.random.normal(kx2, (1024, 16), jnp.float32)
    out_b = jax.block_until_ready(micro_model(xb, w1, b1, w2, b2))
    assert out_b.shape == (1024, 4)
    assert jnp.allclose(out_b, _reference(xb, w1, b1, w2, b2), atol=1e-5, rtol=1e-5)

    # 3) Multi-block path with a partial last block and B % 8 != 0:
    #    exercises the strip-mined fori_loop and masked OOB writeback.
    xc = jax.random.normal(kx3, (8213, 16), jnp.float32)
    out_c = jax.block_until_ready(micro_model(xc, w1, b1, w2, b2))
    assert out_c.shape == (8213, 4)
    assert jnp.allclose(out_c, _reference(xc, w1, b1, w2, b2), atol=1e-5, rtol=1e-5)

    print("KERNEL_OK")
</pallas_src>

<mosaic_0001>
module attributes {stable_mosaic.version = 11 : i64} {
  func.func @kernel(%arg0: i32, %arg1: memref<8x128xf32, #tpu.memory_space<vmem>>, %arg2: memref<128x64xf32, #tpu.memory_space<vmem>>, %arg3: memref<1x64xf32, #tpu.memory_space<vmem>>, %arg4: memref<64x32xf32, #tpu.memory_space<vmem>>, %arg5: memref<1x32xf32, #tpu.memory_space<vmem>>, %arg6: memref<8x32xf32, #tpu.memory_space<vmem>>) attributes {dimension_semantics = [#tpu.dimension_semantics<parallel>], iteration_bounds = array<i64: 1>, scalar_prefetch = 0 : i64, scratch_operands = 0 : i64, tpu.core_type = #tpu.core_type<tc>, window_params = [{transform_indices = @transform_0, window_bounds = array<i64: 8, 128>}, {pipeline_mode = #tpu.pipeline_mode<synchronous>, transform_indices = @transform_1, window_bounds = array<i64: 128, 64>}, {pipeline_mode = #tpu.pipeline_mode<synchronous>, transform_indices = @transform_2, window_bounds = array<i64: 1, 64>}, {pipeline_mode = #tpu.pipeline_mode<synchronous>, transform_indices = @transform_3, window_bounds = array<i64: 64, 32>}, {pipeline_mode = #tpu.pipeline_mode<synchronous>, transform_indices = @transform_4, window_bounds = array<i64: 1, 32>}, {transform_indices = @transform_5, window_bounds = array<i64: 8, 32>}]} {
    %c0 = arith.constant 0 : index
    %c0_0 = arith.constant 0 : index
    %0 = vector.load %arg2[%c0, %c0_0] : memref<128x64xf32, #tpu.memory_space<vmem>>, vector<128x64xf32>
    %c0_1 = arith.constant 0 : index
    %c0_2 = arith.constant 0 : index
    %1 = vector.load %arg3[%c0_1, %c0_2] : memref<1x64xf32, #tpu.memory_space<vmem>>, vector<1x64xf32>
    %c0_3 = arith.constant 0 : index
    %c0_4 = arith.constant 0 : index
    %2 = vector.load %arg4[%c0_3, %c0_4] : memref<64x32xf32, #tpu.memory_space<vmem>>, vector<64x32xf32>
    %c0_5 = arith.constant 0 : index
    %c0_6 = arith.constant 0 : index
    %3 = vector.load %arg5[%c0_5, %c0_6] : memref<1x32xf32, #tpu.memory_space<vmem>>, vector<1x32xf32>
    %c0_7 = arith.constant 0 : index
    %c0_8 = arith.constant 0 : index
    %4 = vector.load %arg1[%c0_7, %c0_8] : memref<8x128xf32, #tpu.memory_space<vmem>>, vector<8x128xf32>
    %cst = arith.constant dense<0.000000e+00> : vector<8x64xf32>
    %5 = tpu.matmul %4, %0, %cst {dimension_numbers = #tpu.dot_dimension_numbers<[1], [0], [0], [1], [0, 0, 1, 1], [], []>} : vector<8x128xf32>, vector<128x64xf32>, vector<8x64xf32> -> vector<8x64xf32>
    %6 = vector.broadcast %1 : vector<1x64xf32> to vector<8x64xf32>
    %7 = arith.addf %5, %6 : vector<8x64xf32>
    %cst_9 = arith.constant 0.000000e+00 : f32
    %8 = vector.broadcast %cst_9 : f32 to vector<8x64xf32>
    %9 = arith.maximumf %7, %8 : vector<8x64xf32>
    %cst_10 = arith.constant dense<0.000000e+00> : vector<8x32xf32>
    %10 = tpu.matmul %9, %2, %cst_10 {dimension_numbers = #tpu.dot_dimension_numbers<[1], [0], [0], [1], [0, 0, 1, 1], [], []>} : vector<8x64xf32>, vector<64x32xf32>, vector<8x32xf32> -> vector<8x32xf32>
    %11 = vector.broadcast %3 : vector<1x32xf32> to vector<8x32xf32>
    %12 = arith.addf %10, %11 : vector<8x32xf32>
    %c0_11 = arith.constant 0 : index
    %c0_12 = arith.constant 0 : index
    %13 = vector.load %arg6[%c0_11, %c0_12] : memref<8x32xf32, #tpu.memory_space<vmem>>, vector<8x32xf32>
    tpu.vector_store %arg6[%c0_11, %c0_12], %12 {strides = array<i32>} : memref<8x32xf32, #tpu.memory_space<vmem>>, vector<8x32xf32>,
    return
  }
  func.func @transform_0(%arg0: i32) -> (i32, i32) {
    %c0_i32 = arith.constant 0 : i32
    %c0_i32_0 = arith.constant 0 : i32
    return %arg0, %c0_i32 : i32, i32
  }
  func.func @transform_1(%arg0: i32) -> (i32, i32) {
    %c0_i32 = arith.constant 0 : i32
    %c0_i32_0 = arith.constant 0 : i32
    %c0_i32_1 = arith.constant 0 : i32
    return %c0_i32, %c0_i32_0 : i32, i32
  }
  func.func @transform_2(%arg0: i32) -> (i32, i32) {
    %c0_i32 = arith.constant 0 : i32
    %c0_i32_0 = arith.constant 0 : i32
    %c0_i32_1 = arith.constant 0 : i32
    return %c0_i32, %c0_i32_0 : i32, i32
  }
  func.func @transform_3(%arg0: i32) -> (i32, i32) {
    %c0_i32 = arith.constant 0 : i32
    %c0_i32_0 = arith.constant 0 : i32
    %c0_i32_1 = arith.constant 0 : i32
    return %c0_i32, %c0_i32_0 : i32, i32
  }
  func.func @transform_4(%arg0: i32) -> (i32, i32) {
    %c0_i32 = arith.constant 0 : i32
    %c0_i32_0 = arith.constant 0 : i32
    %c0_i32_1 = arith.constant 0 : i32
    return %c0_i32, %c0_i32_0 : i32, i32
  }
  func.func @transform_5(%arg0: i32) -> (i32, i32) {
    %c0_i32 = arith.constant 0 : i32
    %c0_i32_0 = arith.constant 0 : i32
    return %arg0, %c0_i32 : i32, i32
  }
}

</mosaic_0001>

<llo_original>
// kernel: tpu_custom_call.1
$region0: #{tpu_custom_call.1}
  #allocation0 [shape = 'u32[]', space=smem, size = 0x4, offset = 0x4, fixed_abs, tag = 'smem constant byte address 0x4 - core index']
  #allocation1 [shape = 'u32[144,128]{1,0:T(1,128)}', space=vmem, size = 0x12000, scoped, tag = 'internal scratch']
  %s0 = inlined_call_operand.vmem [shape: f32[8,128], index: 0, kind: input, shape index: {}]
  %s1 = inlined_call_operand.vmem [shape: f32[128,64], index: 1, kind: input, shape index: {}]
  %s2 = inlined_call_operand.vmem [shape: f32[1,64], index: 2, kind: input, shape index: {}]
  %s3 = inlined_call_operand.vmem [shape: f32[64,32], index: 3, kind: input, shape index: {}]
  %s4 = inlined_call_operand.vmem [shape: f32[1,32], index: 4, kind: input, shape index: {}]
  %s5 = inlined_call_operand.hbm [shape: f32[8,32], index: 5, kind: output, shape index: {}]
  %s6 = sld [smem:[#allocation0]]
  $region30: #{tpu_custom_call.1} parent=0
    _
  %s8 = ssub.s32 1, %s6
  %s9 = scalar_select 0, %s8, %s6
  $region1: #{tpu_custom_call.1} parent=0
    #allocation2 [shape = 'u8[4096]{0}', space=vmem, size = 0x1000, scoped, tag = 'output window, operand 0, single buffered']
    #allocation3 [shape = 's32[1]{0}', space=sflag, size = 0x4, scoped, tag = 'scoped memory for tpu_custom_call.1']
    %10 = vsyncpa [#allocation3], 0
    // Predicated region
    $region2: #{tpu_custom_call.1} parent=1 // pred_check
      _
    $region3: #{tpu_custom_call.1} parent=1 // pred_check_branch
      %12 = sbr.rel (0) target = $region5
    $region4: #{tpu_custom_call.1} parent=1 // pred_region
      _
    $region5: #{tpu_custom_call.1} parent=1 // pred_fallthru
      _
    // Predicated region
    $region6: #{tpu_custom_call.1} parent=1 // pred_check
      _
    $region7: #{tpu_custom_call.1} parent=1 // pred_check_branch
      %14 = sbr.rel (0) target = $region9
    $region8: #{tpu_custom_call.1} parent=1 // pred_region
      _
    $region9: #{tpu_custom_call.1} parent=1 // pred_fallthru
      _
    // Predicated region
    $region10: #{tpu_custom_call.1} parent=1 // pred_check
      _
    $region11: #{tpu_custom_call.1} parent=1 // pred_check_branch
      %16 = sbr.rel (0) target = $region13
    $region12: #{tpu_custom_call.1} parent=1 // pred_region
      _
    $region13: #{tpu_custom_call.1} parent=1 // pred_fallthru
      _
    // Predicated region
    $region14: #{tpu_custom_call.1} parent=1 // pred_check
      _
    $region15: #{tpu_custom_call.1} parent=1 // pred_check_branch
      %18 = sbr.rel (0) target = $region17
    $region16: #{tpu_custom_call.1} parent=1 // pred_region
      _
    $region17: #{tpu_custom_call.1} parent=1 // pred_fallthru
      _
    // Predicated region
    $region18: #{tpu_custom_call.1} parent=1 // pred_check
      _
    $region19: #{tpu_custom_call.1} parent=1 // pred_check_branch
      %20 = sbr.rel (0) target = $region21
    $region20: #{tpu_custom_call.1} parent=1 // pred_region
      _
    $region21: #{tpu_custom_call.1} parent=1 // pred_fallthru
      _
    %v21 = vld [vmem:[%s1] sm:$0xff]
    %v22 = vld [vmem:[%s1 + $0x8] sm:$0xff]
    %v23 = vld [vmem:[%s1 + $0x10] sm:$0xff]
    %v24 = vld [vmem:[%s1 + $0x18] sm:$0xff]
    %v25 = vld [vmem:[%s1 + $0x20] sm:$0xff]
    %v26 = vld [vmem:[%s1 + $0x28] sm:$0xff]
    %v27 = vld [vmem:[%s1 + $0x30] sm:$0xff]
    %v28 = vld [vmem:[%s1 + $0x38] sm:$0xff]
    %v29 = vld [vmem:[%s1 + $0x40] sm:$0xff]
    %v30 = vld [vmem:[%s1 + $0x48] sm:$0xff]
    %v31 = vld [vmem:[%s1 + $0x50] sm:$0xff]
    %v32 = vld [vmem:[%s1 + $0x58] sm:$0xff]
    %v33 = vld [vmem:[%s1 + $0x60] sm:$0xff]
    %v34 = vld [vmem:[%s1 + $0x68] sm:$0xff]
    %v35 = vld [vmem:[%s1 + $0x70] sm:$0xff]
    %v36 = vld [vmem:[%s1 + $0x78] sm:$0xff]
    %v37 = vld [vmem:[%s2] sm:$0x1]
    %v38 = vld [vmem:[%s3] sm:$0xff]
    %v39 = vld [vmem:[%s3 + $0x8] sm:$0xff]
    %v40 = vld [vmem:[%s3 + $0x10] sm:$0xff]
    %v41 = vld [vmem:[%s3 + $0x18] sm:$0xff]
    %v42 = vld [vmem:[%s3 + $0x20] sm:$0xff]
    %v43 = vld [vmem:[%s3 + $0x28] sm:$0xff]
    %v44 = vld [vmem:[%s3 + $0x30] sm:$0xff]
    %v45 = vld [vmem:[%s3 + $0x38] sm:$0xff]
    %v46 = vld [vmem:[%s4] sm:$0x1]
    %v47 = vld [vmem:[%s0] sm:$0xff]
    %v49 = vlaneseq
    %v50 = vshrl.u32 %v49, 7
    %v51 = vsub.s32 0, %v50
    %v52 = vrot.slane %v37, %v51
    %54 = vmatprep.subr.mxu0 0.0
    %55 = vmatpush1.msra.mxu0 %v36
    %56 = vmatprep.subr.mxu0 0.0
    %57 = vmatpush1.msra.mxu0 %v35
    %58 = vmatprep.subr.mxu0 0.0
    %59 = vmatpush1.msra.mxu0 %v34
    %60 = vmatprep.subr.mxu0 0.0
    %61 = vmatpush1.msra.mxu0 %v33
    %62 = vmatprep.subr.mxu0 0.0
    %63 = vmatpush1.msra.mxu0 %v32
    %64 = vmatprep.subr.mxu0 0.0
    %65 = vmatpush1.msra.mxu0 %v31
    %66 = vmatprep.subr.mxu0 0.0
    %67 = vmatpush1.msra.mxu0 %v30
    %68 = vmatprep.subr.mxu0 0.0
    %69 = vmatpush1.msra.mxu0 %v29
    %70 = vmatprep.subr.mxu0 0.0
    %71 = vmatpush1.msra.mxu0 %v28
    %72 = vmatprep.subr.mxu0 0.0
    %73 = vmatpush1.msra.mxu0 %v27
    %74 = vmatprep.subr.mxu0 0.0
    %75 = vmatpush1.msra.mxu0 %v26
    %76 = vmatprep.subr.mxu0 0.0
    %77 = vmatpush1.msra.mxu0 %v25
    %78 = vmatprep.subr.mxu0 0.0
    %79 = vmatpush1.msra.mxu0 %v24
    %80 = vmatprep.subr.mxu0 0.0
    %81 = vmatpush1.msra.mxu0 %v23
    %82 = vmatprep.subr.mxu0 0.0
    %83 = vmatpush1.msra.mxu0 %v22
    %84 = vmatprep.subr.mxu0 0.0
    %85 = vmatpush1.msra.mxu0 %v21
    %86 = vmatprep.subr.mxu0 0.0
    %87 = vmatpush2.msra.mxu0 0.0
    %88 = vmatprep.subr.mxu0 0.0
    %89 = vmatpush2.msra.mxu0 0.0
    %90 = vmatprep.subr.mxu0 0.0
    %91 = vmatpush2.msra.mxu0 0.0
    %92 = vmatprep.subr.mxu0 0.0
    %93 = vmatpush2.msra.mxu0 0.0
    %94 = vmatprep.subr.mxu0 0.0
    %95 = vmatpush2.msra.mxu0 0.0
    %96 = vmatprep.subr.mxu0 0.0
    %97 = vmatpush2.msra.mxu0 0.0
    %98 = vmatprep.subr.mxu0 0.0
    %99 = vmatpush2.msra.mxu0 0.0
    %100 = vmatprep.subr.mxu0 0.0
    %101 = vmatpush2.msra.mxu0 0.0
    %102 = vmatprep.subr.mxu0 0.0
    %103 = vmatpush2.msra.mxu0 0.0
    %104 = vmatprep.subr.mxu0 0.0
    %105 = vmatpush2.msra.mxu0 0.0
    %106 = vmatprep.subr.mxu0 0.0
    %107 = vmatpush2.msra.mxu0 0.0
    %108 = vmatprep.subr.mxu0 0.0
    %109 = vmatpush2.msra.mxu0 0.0
    %110 = vmatprep.subr.mxu0 0.0
    %111 = vmatpush2.msra.mxu0 0.0
    %112 = vmatprep.subr.mxu0 0.0
    %113 = vmatpush2.msra.mxu0 0.0
    %114 = vmatprep.subr.mxu0 0.0
    %115 = vmatpush2.msra.mxu0 0.0
    %116 = vmatprep.subr.mxu0 0.0
    %117 = vmatpush2.msra.mxu0 0.0
    %118 = vmatprep.mubr.f32.mxu0 0.0
    %119 = vmatmul.mubr.f32.gmra.mxu0 %v47
    %v120 = vpop.f32.mrf.mxu0
    %v121 = vadd.f32 %v52, %v120
    %v122 = vpop.f32.mrf.mxu0
    %123 = vdwg.mxu0
    %v124 = vmax.f32 %v121, 0.0
    %v126 = vlaneseq
    %v127 = vshrl.u32 %v126, 7
    %v128 = vsub.s32 0, %v127
    %v129 = vrot.slane %v46, %v128
    %vm131 = vcmask 523264
    %v133 = vsel %vm131, %v124, 0
    %135 = vmatprep.subr.mxu0 0.0
    %136 = vmatpush1.msra.mxu0 0.0
    %137 = vmatprep.subr.mxu0 0.0
    %138 = vmatpush1.msra.mxu0 0.0
    %139 = vmatprep.subr.mxu0 0.0
    %140 = vmatpush1.msra.mxu0 0.0
    %141 = vmatprep.subr.mxu0 0.0
    %142 = vmatpush1.msra.mxu0 0.0
    %143 = vmatprep.subr.mxu0 0.0
    %144 = vmatpush1.msra.mxu0 0.0
    %145 = vmatprep.subr.mxu0 0.0
    %146 = vmatpush1.msra.mxu0 0.0
    %147 = vmatprep.subr.mxu0 0.0
    %148 = vmatpush1.msra.mxu0 0.0
    %149 = vmatprep.subr.mxu0 0.0
    %150 = vmatpush1.msra.mxu0 0.0
    %151 = vmatprep.subr.mxu0 0.0
    %152 = vmatpush1.msra.mxu0 %v45
    %153 = vmatprep.subr.mxu0 0.0
    %154 = vmatpush1.msra.mxu0 %v44
    %155 = vmatprep.subr.mxu0 0.0
    %156 = vmatpush1.msra.mxu0 %v43
    %157 = vmatprep.subr.mxu0 0.0
    %158 = vmatpush1.msra.mxu0 %v42
    %159 = vmatprep.subr.mxu0 0.0
    %160 = vmatpush1.msra.mxu0 %v41
    %161 = vmatprep.subr.mxu0 0.0
    %162 = vmatpush1.msra.mxu0 %v40
    %163 = vmatprep.subr.mxu0 0.0
    %164 = vmatpush1.msra.mxu0 %v39
    %165 = vmatprep.subr.mxu0 0.0
    %166 = vmatpush1.msra.mxu0 %v38
    %167 = vmatprep.subr.mxu0 0.0
    %168 = vmatpush2.msra.mxu0 0.0
    %169 = vmatprep.subr.mxu0 0.0
    %170 = vmatpush2.msra.mxu0 0.0
    %171 = vmatprep.subr.mxu0 0.0
    %172 = vmatpush2.msra.mxu0 0.0
    %173 = vmatprep.subr.mxu0 0.0
    %174 = vmatpush2.msra.mxu0 0.0
    %175 = vmatprep.subr.mxu0 0.0
    %176 = vmatpush2.msra.mxu0 0.0
    %177 = vmatprep.subr.mxu0 0.0
    %178 = vmatpush2.msra.mxu0 0.0
    %179 = vmatprep.subr.mxu0 0.0
    %180 = vmatpush2.msra.mxu0 0.0
    %181 = vmatprep.subr.mxu0 0.0
    %182 = vmatpush2.msra.mxu0 0.0
    %183 = vmatprep.subr.mxu0 0.0
    %184 = vmatpush2.msra.mxu0 0.0
    %185 = vmatprep.subr.mxu0 0.0
    %186 = vmatpush2.msra.mxu0 0.0
    %187 = vmatprep.subr.mxu0 0.0
    %188 = vmatpush2.msra.mxu0 0.0
    %189 = vmatprep.subr.mxu0 0.0
    %190 = vmatpush2.msra.mxu0 0.0
    %191 = vmatprep.subr.mxu0 0.0
    %192 = vmatpush2.msra.mxu0 0.0
    %193 = vmatprep.subr.mxu0 0.0
    %194 = vmatpush2.msra.mxu0 0.0
    %195 = vmatprep.subr.mxu0 0.0
    %196 = vmatpush2.msra.mxu0 0.0
    %197 = vmatprep.subr.mxu0 0.0
    %198 = vmatpush2.msra.mxu0 0.0
    %199 = vmatprep.mubr.f32.mxu0 0.0
    %200 = vmatmul.mubr.f32.gmra.mxu0 %v133
    %v201 = vpop.f32.mrf.mxu0
    %v202 = vadd.f32 %v129, %v201
    %v203 = vpop.f32.mrf.mxu0
    %204 = vdwg.mxu0
    %vm205 = vcmask 261120
    %206 = vst.msk [vmem:[#allocation2] sm:$0xff] %vm205, %v202
    // Predicated region
    $region22: #{tpu_custom_call.1} parent=1 // pred_check
      _
    $region23: #{tpu_custom_call.1} parent=1 // pred_check_branch
      %208 = sbr.rel (0) target = $region25
    $region24: #{tpu_custom_call.1} parent=1 // pred_region
      %s210 = ssub.s32 128, 128
      %211 = vsyncadd [#allocation3], %s210
      %s213 = sshll.u32 [#allocation2], 4
      %s214 = int_to_ptr.vmem [resolvable:$true] %s213
      %216 = dma.vmem_to_hbm [thread:$0]  %s214, 128, %s5, [#allocation3]
    $region25: #{tpu_custom_call.1} parent=1 // pred_fallthru
      _
    // Predicated region
    $region26: #{tpu_custom_call.1} parent=1 // pred_check
      _
    $region27: #{tpu_custom_call.1} parent=1 // pred_check_branch
      %218 = sbr.rel (0) target = $region29
    $region28: #{tpu_custom_call.1} parent=1 // pred_region
      %219 = dma.done [#allocation3], 128
    $region29: #{tpu_custom_call.1} parent=1 // pred_fallthru
      _
    %220 = vsyncpa [#allocation3], 1

</llo_original>
